<compile_context>
chip_gen: v5e
topology: v5e:2x2
jax: 0.10.0
libtpu: 0.0.40
codegen_flags: <defaults>
</compile_context>

<pallas_src>
import functools

import jax
import jax.numpy as jnp
from jax.experimental import pallas as pl
from jax.experimental.pallas import tpu as pltpu


def _round_up(x: int, m: int) -> int:
    return ((x + m - 1) // m) * m


def _pick_tile(np_: int, budget_bytes: int = 4 << 20, max_tile: int = 512) -> int:
    """Largest multiple of 128 that divides np_, <= max_tile, and keeps a
    (np_, TN) f32 block within `budget_bytes` (so 2x double-buffering fits the
    16 MiB v5e default scoped VMEM with headroom)."""
    best = 128
    for t in range(128, min(np_, max_tile) + 1, 128):
        if np_ % t == 0 and np_ * t * 4 <= budget_bytes:
            best = t
    return best


def _p_kernel(k_ref, h_ref, p_ref):
    """P[:, tile] = K^T @ H[:, tile] (contract dim 0 directly, no transpose)."""
    p_ref[...] = jax.lax.dot_general(
        k_ref[...], h_ref[...],
        dimension_numbers=(((0,), (0,)), ((), ())),
        preferred_element_type=jnp.float32)


def _obj_kernel(scal_ref, theta_ref, p_ref, l_ref, out_ref, g_ref, acc_ref, *,
                nt_half):
    """Per column tile of [L_Y | L_S]: Q = P @ L_tile, accumulate
    sum(Q * (G @ Q)) into the proper (Y or S) slot; finalize obj on last step."""
    j = pl.program_id(0)

    @pl.when(j == 0)
    def _init():
        # G = theta @ theta^T (contract lane dim of both operands).
        g_ref[...] = jax.lax.dot_general(
            theta_ref[...], theta_ref[...],
            dimension_numbers=(((1,), (1,)), ((), ())),
            preferred_element_type=jnp.float32)
        acc_ref[0] = jnp.float32(0.0)
        acc_ref[1] = jnp.float32(0.0)

    q = jnp.dot(p_ref[...], l_ref[...], preferred_element_type=jnp.float32)   # (Rp, TN)
    gq = jnp.dot(g_ref[...], q, preferred_element_type=jnp.float32)           # (Rp, TN)
    contrib = jnp.sum(q * gq)

    is_y = j < nt_half   # first half of the wide operand is L_Y, second is L_S
    acc_ref[0] += jnp.where(is_y, contrib, jnp.float32(0.0))
    acc_ref[1] += jnp.where(is_y, jnp.float32(0.0), contrib)

    @pl.when(j == pl.num_programs(0) - 1)
    def _finalize():
        eps = scal_ref[0]
        n_f = scal_ref[1]
        n2 = n_f * n_f
        dep_y = jnp.sqrt(acc_ref[0]) / n2
        dep_s = jnp.sqrt(acc_ref[1]) / n2
        w = eps - dep_s
        t1 = -dep_y
        t3 = jnp.where(w < jnp.float32(0.0),
                       jnp.square(jnp.float32(250.0) * w),
                       jnp.float32(0.0))
        out_ref[0] = t1 + t3


@jax.jit
def gdopt_forward(theta, K, H, L_Y, L_S, epsilon):
    """Zero-pad to TPU-friendly tiles and run the two Pallas kernels.

    NOTE: in a real optimization loop H / L_Y / L_S / K are constant across
    iterations; their padding should be hoisted out of the loop (here jit at
    least fuses the pad ops into the same program)."""
    r, n = theta.shape
    assert K.shape == (n, r)
    assert H.shape == (n, n) and L_Y.shape == (n, n) and L_S.shape == (n, n)

    Rp = _round_up(max(r, 8), 8)
    Np = _round_up(max(n, 128), 128)
    TN = _pick_tile(Np)

    f32 = jnp.float32
    theta_p = jnp.zeros((Rp, Np), f32).at[:r, :n].set(theta.astype(f32))
    K_p = jnp.zeros((Np, Rp), f32).at[:n, :r].set(K.astype(f32))
    H_p = jnp.zeros((Np, Np), f32).at[:n, :n].set(H.astype(f32))
    # Fused wide operand [L_Y | L_S] -> one matmul per tile instead of two.
    L_wide = (jnp.zeros((Np, 2 * Np), f32)
              .at[:n, :n].set(L_Y.astype(f32))
              .at[:n, Np:Np + n].set(L_S.astype(f32)))
    # epsilon / n go through SMEM (no recompile when epsilon changes).
    scalars = jnp.stack([jnp.asarray(epsilon, f32), jnp.asarray(float(n), f32)])

    # ---- kernel 1: P = K^T @ H, tiled over H columns ("parallel" for megacore).
    nt_h = Np // TN
    P = pl.pallas_call(
        _p_kernel,
        out_shape=jax.ShapeDtypeStruct((Rp, Np), f32),
        grid=(nt_h,),
        in_specs=[pl.BlockSpec((Np, Rp), lambda j: (0, 0)),
                  pl.BlockSpec((Np, TN), lambda j: (0, j))],
        out_specs=pl.BlockSpec((Rp, TN), lambda j: (0, j)),
        compiler_params=pltpu.CompilerParams(
            dimension_semantics=("parallel",)),
    )(K_p, H_p)

    # ---- kernel 2: tiled square-sum accumulation + scalar objective tail.
    nt_l = (2 * Np) // TN
    nt_half = Np // TN
    obj = pl.pallas_call(
        functools.partial(_obj_kernel, nt_half=nt_half),
        out_shape=jax.ShapeDtypeStruct((1,), f32),
        grid=(nt_l,),
        in_specs=[pl.BlockSpec(memory_space=pltpu.MemorySpace.SMEM),   # [eps, n]
                  pl.BlockSpec((Rp, Np), lambda j: (0, 0)),            # theta
                  pl.BlockSpec((Rp, Np), lambda j: (0, 0)),            # P
                  pl.BlockSpec((Np, TN), lambda j: (0, j))],           # [L_Y|L_S]
        out_specs=pl.BlockSpec(memory_space=pltpu.MemorySpace.SMEM),
        scratch_shapes=[pltpu.VMEM((Rp, Rp), f32),   # G = theta @ theta^T
                        pltpu.SMEM((2,), f32)],      # [sumY, sumS] accumulators
        compiler_params=pltpu.CompilerParams(
            dimension_semantics=("arbitrary",)),
    )(scalars, theta_p, P, L_wide)
    return obj[0]


def _reference(theta, K, H, L_Y, L_S, epsilon, n):
    """Pure-JAX reference of objective_func (float32), direct formula."""
    def dep(L):
        A = K @ theta
        return jnp.linalg.norm(A.T @ (H @ L)) / (n * n)

    w = jnp.float32(epsilon) - dep(L_S)
    t1 = -dep(L_Y)
    t3 = jnp.where(w < 0.0, jnp.square(250.0 * w), 0.0)
    return t1 + t3


if __name__ == "__main__":
    # Small shapes consistent with the module: theta:(r,n), x=K:(n,r),
    # H / L_Y / L_S : (n,n).
    n, r = 16, 4
    epsilon = 0.05

    key = jax.random.PRNGKey(0)
    k_theta, k_K, k_H, k_LY, k_LS = jax.random.split(key, 5)
    theta = jax.random.uniform(k_theta, (r, n), dtype=jnp.float32)  # torch.rand(r, n)
    K = jax.random.uniform(k_K, (n, r), dtype=jnp.float32)          # module input x
    H = jax.random.uniform(k_H, (n, n), dtype=jnp.float32)
    L_Y = jax.random.uniform(k_LY, (n, n), dtype=jnp.float32)
    L_S = jax.random.uniform(k_LS, (n, n), dtype=jnp.float32)

    obj = gdopt_forward(theta, K, H, L_Y, L_S, epsilon)
    obj = jax.block_until_ready(obj)

    ref = _reference(theta, K, H, L_Y, L_S, epsilon, n)
    assert jnp.allclose(obj, ref, rtol=1e-4, atol=1e-4), (obj, ref)

    print("KERNEL_OK")
</pallas_src>

<mosaic_0001>
module attributes {stable_mosaic.version = 11 : i64} {
  func.func @_p_kernel(%arg0: i32, %arg1: memref<128x8xf32, #tpu.memory_space<vmem>>, %arg2: memref<128x128xf32, #tpu.memory_space<vmem>>, %arg3: memref<8x128xf32, #tpu.memory_space<vmem>>) attributes {dimension_semantics = [#tpu.dimension_semantics<parallel>], iteration_bounds = array<i64: 1>, scalar_prefetch = 0 : i64, scratch_operands = 0 : i64, tpu.core_type = #tpu.core_type<tc>, window_params = [{pipeline_mode = #tpu.pipeline_mode<synchronous>, transform_indices = @transform_0, window_bounds = array<i64: 128, 8>}, {transform_indices = @transform_1, window_bounds = array<i64: 128, 128>}, {transform_indices = @transform_2, window_bounds = array<i64: 8, 128>}]} {
    %c0 = arith.constant 0 : index
    %c0_0 = arith.constant 0 : index
    %0 = vector.load %arg1[%c0, %c0_0] : memref<128x8xf32, #tpu.memory_space<vmem>>, vector<128x8xf32>
    %c0_1 = arith.constant 0 : index
    %c0_2 = arith.constant 0 : index
    %1 = vector.load %arg2[%c0_1, %c0_2] : memref<128x128xf32, #tpu.memory_space<vmem>>, vector<128x128xf32>
    %cst = arith.constant dense<0.000000e+00> : vector<8x128xf32>
    %2 = tpu.matmul %0, %1, %cst {dimension_numbers = #tpu.dot_dimension_numbers<[0], [0], [1], [1], [0, 1, 1, 1], [], []>} : vector<128x8xf32>, vector<128x128xf32>, vector<8x128xf32> -> vector<8x128xf32>
    %c0_3 = arith.constant 0 : index
    %c0_4 = arith.constant 0 : index
    %3 = vector.load %arg3[%c0_3, %c0_4] : memref<8x128xf32, #tpu.memory_space<vmem>>, vector<8x128xf32>
    tpu.vector_store %arg3[%c0_3, %c0_4], %2 {strides = array<i32>} : memref<8x128xf32, #tpu.memory_space<vmem>>, vector<8x128xf32>,
    return
  }
  func.func @transform_0(%arg0: i32) -> (i32, i32) {
    %c0_i32 = arith.constant 0 : i32
    %c0_i32_0 = arith.constant 0 : i32
    %c0_i32_1 = arith.constant 0 : i32
    return %c0_i32, %c0_i32_0 : i32, i32
  }
  func.func @transform_1(%arg0: i32) -> (i32, i32) {
    %c0_i32 = arith.constant 0 : i32
    %c0_i32_0 = arith.constant 0 : i32
    return %c0_i32, %arg0 : i32, i32
  }
  func.func @transform_2(%arg0: i32) -> (i32, i32) {
    %c0_i32 = arith.constant 0 : i32
    %c0_i32_0 = arith.constant 0 : i32
    return %c0_i32, %arg0 : i32, i32
  }
}

module attributes {stable_mosaic.version = 11 : i64} {
  func.func @_obj_kernel(%arg0: i32, %arg1: memref<2xf32, #tpu.memory_space<smem>>, %arg2: memref<8x128xf32, #tpu.memory_space<vmem>>, %arg3: memref<8x128xf32, #tpu.memory_space<vmem>>, %arg4: memref<128x128xf32, #tpu.memory_space<vmem>>, %arg5: memref<1xf32, #tpu.memory_space<smem>>, %arg6: memref<8x8xf32, #tpu.memory_space<vmem>>, %arg7: memref<2xf32, #tpu.memory_space<smem>>) attributes {dimension_semantics = [#tpu.dimension_semantics<arbitrary>], iteration_bounds = array<i64: 2>, scalar_prefetch = 0 : i64, scratch_operands = 2 : i64, tpu.core_type = #tpu.core_type<tc>, window_params = [{transform_indices = @transform_0, window_bounds = array<i64: 2>}, {pipeline_mode = #tpu.pipeline_mode<synchronous>, transform_indices = @transform_1, window_bounds = array<i64: 8, 128>}, {pipeline_mode = #tpu.pipeline_mode<synchronous>, transform_indices = @transform_2, window_bounds = array<i64: 8, 128>}, {transform_indices = @transform_3, window_bounds = array<i64: 128, 128>}, {transform_indices = @transform_4, window_bounds = array<i64: 1>}]} {
    %c0_i32 = arith.constant 0 : i32
    %0 = arith.cmpi eq, %arg0, %c0_i32 : i32
    %1 = arith.extui %0 : i1 to i32
    %c0_i32_0 = arith.constant 0 : i32
    %2 = arith.cmpi ne, %1, %c0_i32_0 : i32
    scf.if %2 {
      %c0_15 = arith.constant 0 : index
      %c0_16 = arith.constant 0 : index
      %25 = vector.load %arg2[%c0_15, %c0_16] : memref<8x128xf32, #tpu.memory_space<vmem>>, vector<8x128xf32>
      %c0_17 = arith.constant 0 : index
      %c0_18 = arith.constant 0 : index
      %26 = vector.load %arg2[%c0_17, %c0_18] : memref<8x128xf32, #tpu.memory_space<vmem>>, vector<8x128xf32>
      %cst_19 = arith.constant dense<0.000000e+00> : vector<8x8xf32>
      %27 = tpu.matmul %25, %26, %cst_19 {dimension_numbers = #tpu.dot_dimension_numbers<[1], [1], [0], [0], [0, 0, 1, 0], [], []>} : vector<8x128xf32>, vector<8x128xf32>, vector<8x8xf32> -> vector<8x8xf32>
      %c0_20 = arith.constant 0 : index
      %c0_21 = arith.constant 0 : index
      %28 = vector.load %arg6[%c0_20, %c0_21] : memref<8x8xf32, #tpu.memory_space<vmem>>, vector<8x8xf32>
      tpu.vector_store %arg6[%c0_20, %c0_21], %27 {strides = array<i32>} : memref<8x8xf32, #tpu.memory_space<vmem>>, vector<8x8xf32>,
      %cst_22 = arith.constant 0.000000e+00 : f32
      %c0_23 = arith.constant 0 : index
      %29 = memref.load %arg7[%c0_23] : memref<2xf32, #tpu.memory_space<smem>>
      memref.store %cst_22, %arg7[%c0_23] : memref<2xf32, #tpu.memory_space<smem>>
      %cst_24 = arith.constant 0.000000e+00 : f32
      %c1_25 = arith.constant 1 : index
      %30 = memref.load %arg7[%c1_25] : memref<2xf32, #tpu.memory_space<smem>>
      memref.store %cst_24, %arg7[%c1_25] : memref<2xf32, #tpu.memory_space<smem>>
    } else {
    }
    %c0 = arith.constant 0 : index
    %c0_1 = arith.constant 0 : index
    %3 = vector.load %arg3[%c0, %c0_1] : memref<8x128xf32, #tpu.memory_space<vmem>>, vector<8x128xf32>
    %c0_2 = arith.constant 0 : index
    %c0_3 = arith.constant 0 : index
    %4 = vector.load %arg4[%c0_2, %c0_3] : memref<128x128xf32, #tpu.memory_space<vmem>>, vector<128x128xf32>
    %cst = arith.constant dense<0.000000e+00> : vector<8x128xf32>
    %5 = tpu.matmul %3, %4, %cst {dimension_numbers = #tpu.dot_dimension_numbers<[1], [0], [0], [1], [0, 0, 1, 1], [], []>} : vector<8x128xf32>, vector<128x128xf32>, vector<8x128xf32> -> vector<8x128xf32>
    %c0_4 = arith.constant 0 : index
    %c0_5 = arith.constant 0 : index
    %6 = vector.load %arg6[%c0_4, %c0_5] : memref<8x8xf32, #tpu.memory_space<vmem>>, vector<8x8xf32>
    %cst_6 = arith.constant dense<0.000000e+00> : vector<8x128xf32>
    %7 = tpu.matmul %6, %5, %cst_6 {dimension_numbers = #tpu.dot_dimension_numbers<[1], [0], [0], [1], [0, 0, 1, 1], [], []>} : vector<8x8xf32>, vector<8x128xf32>, vector<8x128xf32> -> vector<8x128xf32>
    %8 = arith.mulf %5, %7 : vector<8x128xf32>
    %9 = vector.shape_cast %8 : vector<8x128xf32> to vector<1x8x128xf32>
    %cst_7 = arith.constant dense<0.000000e+00> : vector<1xf32>
    %10 = vector.multi_reduction <add>, %9, %cst_7 [1, 2] : vector<1x8x128xf32> to vector<1xf32>
    %11 = vector.shape_cast %10 : vector<1xf32> to vector<1x1x1xf32>
    %12 = vector.extract %11[0, 0, 0] : f32 from vector<1x1x1xf32>
    %c1_i32 = arith.constant 1 : i32
    %13 = arith.cmpi slt, %arg0, %c1_i32 : i32
    %c0_8 = arith.constant 0 : index
    %14 = memref.load %arg7[%c0_8] : memref<2xf32, #tpu.memory_space<smem>>
    %cst_9 = arith.constant 0.000000e+00 : f32
    %15 = arith.select %13, %12, %cst_9 : f32
    %16 = arith.addf %14, %15 : f32
    %c0_10 = arith.constant 0 : index
    %17 = memref.load %arg7[%c0_10] : memref<2xf32, #tpu.memory_space<smem>>
    memref.store %16, %arg7[%c0_10] : memref<2xf32, #tpu.memory_space<smem>>
    %c1 = arith.constant 1 : index
    %18 = memref.load %arg7[%c1] : memref<2xf32, #tpu.memory_space<smem>>
    %cst_11 = arith.constant 0.000000e+00 : f32
    %19 = arith.select %13, %cst_11, %12 : f32
    %20 = arith.addf %18, %19 : f32
    %c1_12 = arith.constant 1 : index
    %21 = memref.load %arg7[%c1_12] : memref<2xf32, #tpu.memory_space<smem>>
    memref.store %20, %arg7[%c1_12] : memref<2xf32, #tpu.memory_space<smem>>
    %c1_i32_13 = arith.constant 1 : i32
    %22 = arith.cmpi eq, %arg0, %c1_i32_13 : i32
    %23 = arith.extui %22 : i1 to i32
    %c0_i32_14 = arith.constant 0 : i32
    %24 = arith.cmpi ne, %23, %c0_i32_14 : i32
    scf.if %24 {
      %c0_15 = arith.constant 0 : index
      %25 = memref.load %arg1[%c0_15] : memref<2xf32, #tpu.memory_space<smem>>
      %c1_16 = arith.constant 1 : index
      %26 = memref.load %arg1[%c1_16] : memref<2xf32, #tpu.memory_space<smem>>
      %27 = arith.mulf %26, %26 : f32
      %c0_17 = arith.constant 0 : index
      %28 = memref.load %arg7[%c0_17] : memref<2xf32, #tpu.memory_space<smem>>
      %29 = math.sqrt %28 : f32
      %30 = arith.divf %29, %27 : f32
      %c1_18 = arith.constant 1 : index
      %31 = memref.load %arg7[%c1_18] : memref<2xf32, #tpu.memory_space<smem>>
      %32 = math.sqrt %31 : f32
      %33 = arith.divf %32, %27 : f32
      %34 = arith.subf %25, %33 : f32
      %cst_19 = arith.constant 0.000000e+00 : f32
      %35 = arith.subf %cst_19, %30 : f32
      %cst_20 = arith.constant 0.000000e+00 : f32
      %36 = arith.cmpf olt, %34, %cst_20 : f32
      %cst_21 = arith.constant 2.500000e+02 : f32
      %37 = arith.mulf %cst_21, %34 : f32
      %38 = arith.mulf %37, %37 : f32
      %cst_22 = arith.constant 0.000000e+00 : f32
      %39 = arith.select %36, %38, %cst_22 : f32
      %40 = arith.addf %35, %39 : f32
      %c0_23 = arith.constant 0 : index
      %41 = memref.load %arg5[%c0_23] : memref<1xf32, #tpu.memory_space<smem>>
      memref.store %40, %arg5[%c0_23] : memref<1xf32, #tpu.memory_space<smem>>
    } else {
    }
    return
  }
  func.func @transform_0(%arg0: i32) -> i32 {
    %c0_i32 = arith.constant 0 : i32
    %c0_i32_0 = arith.constant 0 : i32
    return %c0_i32 : i32
  }
  func.func @transform_1(%arg0: i32) -> (i32, i32) {
    %c0_i32 = arith.constant 0 : i32
    %c0_i32_0 = arith.constant 0 : i32
    %c0_i32_1 = arith.constant 0 : i32
    return %c0_i32, %c0_i32_0 : i32, i32
  }
  func.func @transform_2(%arg0: i32) -> (i32, i32) {
    %c0_i32 = arith.constant 0 : i32
    %c0_i32_0 = arith.constant 0 : i32
    %c0_i32_1 = arith.constant 0 : i32
    return %c0_i32, %c0_i32_0 : i32, i32
  }
  func.func @transform_3(%arg0: i32) -> (i32, i32) {
    %c0_i32 = arith.constant 0 : i32
    %c0_i32_0 = arith.constant 0 : i32
    return %c0_i32, %arg0 : i32, i32
  }
  func.func @transform_4(%arg0: i32) -> i32 {
    %c0_i32 = arith.constant 0 : i32
    %c0_i32_0 = arith.constant 0 : i32
    return %c0_i32 : i32
  }
}

</mosaic_0001>

<llo_original>
// kernel: gdopt_forward.2
$region0: #{gdopt_forward.2}
  #allocation0 [shape = 'u32[]', space=smem, size = 0x4, offset = 0x4, fixed_abs, tag = 'smem constant byte address 0x4 - core index']
  #allocation1 [shape = 'u32[72,128]{1,0:T(1,128)}', space=vmem, size = 0x9000, scoped, tag = 'internal scratch']
  %s0 = inlined_call_operand.vmem [shape: f32[128,8], index: 0, kind: input, shape index: {}]
  %s1 = inlined_call_operand.vmem [shape: f32[128,128], index: 1, kind: input, shape index: {}]
  %s2 = inlined_call_operand.vmem [shape: f32[8,128], index: 2, kind: output, shape index: {}]
  %s3 = sld [smem:[#allocation0]]
  $region18: #{gdopt_forward.2} parent=0
    _
  %s5 = ssub.s32 1, %s3
  %s6 = scalar_select 0, %s5, %s3
  // Predicated region
  $region2: #{gdopt_forward.2} parent=0 // pred_check
    _
  $region3: #{gdopt_forward.2} parent=0 // pred_check_branch
    %8 = sbr.rel (0) target = $region5
  $region4: #{gdopt_forward.2} parent=0 // pred_region
    _
  $region5: #{gdopt_forward.2} parent=0 // pred_fallthru
    _
  // Predicated region
  $region6: #{gdopt_forward.2} parent=0 // pred_check
    _
  $region7: #{gdopt_forward.2} parent=0 // pred_check_branch
    %10 = sbr.rel (0) target = $region9
  $region8: #{gdopt_forward.2} parent=0 // pred_region
    _
  $region9: #{gdopt_forward.2} parent=0 // pred_fallthru
    _
  %v11 = vld [vmem:[%s0] sm:$0xff]
  %v12 = vld [vmem:[%s0 + $0x8] sm:$0xff]
  %v13 = vld [vmem:[%s0 + $0x10] sm:$0xff]
  %v14 = vld [vmem:[%s0 + $0x18] sm:$0xff]
  %v15 = vld [vmem:[%s0 + $0x20] sm:$0xff]
  %v16 = vld [vmem:[%s0 + $0x28] sm:$0xff]
  %v17 = vld [vmem:[%s0 + $0x30] sm:$0xff]
  %v18 = vld [vmem:[%s0 + $0x38] sm:$0xff]
  %v19 = vld [vmem:[%s0 + $0x40] sm:$0xff]
  %v20 = vld [vmem:[%s0 + $0x48] sm:$0xff]
  %v21 = vld [vmem:[%s0 + $0x50] sm:$0xff]
  %v22 = vld [vmem:[%s0 + $0x58] sm:$0xff]
  %v23 = vld [vmem:[%s0 + $0x60] sm:$0xff]
  %v24 = vld [vmem:[%s0 + $0x68] sm:$0xff]
  %v25 = vld [vmem:[%s0 + $0x70] sm:$0xff]
  %v26 = vld [vmem:[%s0 + $0x78] sm:$0xff]
  %v27 = vld [vmem:[%s1] sm:$0xff]
  %v28 = vld [vmem:[%s1 + $0x8] sm:$0xff]
  %v29 = vld [vmem:[%s1 + $0x10] sm:$0xff]
  %v30 = vld [vmem:[%s1 + $0x18] sm:$0xff]
  %v31 = vld [vmem:[%s1 + $0x20] sm:$0xff]
  %v32 = vld [vmem:[%s1 + $0x28] sm:$0xff]
  %v33 = vld [vmem:[%s1 + $0x30] sm:$0xff]
  %v34 = vld [vmem:[%s1 + $0x38] sm:$0xff]
  %v35 = vld [vmem:[%s1 + $0x40] sm:$0xff]
  %v36 = vld [vmem:[%s1 + $0x48] sm:$0xff]
  %v37 = vld [vmem:[%s1 + $0x50] sm:$0xff]
  %v38 = vld [vmem:[%s1 + $0x58] sm:$0xff]
  %v39 = vld [vmem:[%s1 + $0x60] sm:$0xff]
  %v40 = vld [vmem:[%s1 + $0x68] sm:$0xff]
  %v41 = vld [vmem:[%s1 + $0x70] sm:$0xff]
  %v42 = vld [vmem:[%s1 + $0x78] sm:$0xff]
  %43 = vxpose.xlu0.b32.start [1/16] %v11, 128
  %44 = vxpose.xlu0.b32.cont [2/16] %v12, 128
  %45 = vxpose.xlu0.b32.cont [3/16] %v13, 128
  %46 = vxpose.xlu0.b32.cont [4/16] %v14, 128
  %47 = vxpose.xlu0.b32.cont [5/16] %v15, 128
  %48 = vxpose.xlu0.b32.cont [6/16] %v16, 128
  %49 = vxpose.xlu0.b32.cont [7/16] %v17, 128
  %50 = vxpose.xlu0.b32.cont [8/16] %v18, 128
  %51 = vxpose.xlu0.b32.cont [9/16] %v19, 128
  %52 = vxpose.xlu0.b32.cont [10/16] %v20, 128
  %53 = vxpose.xlu0.b32.cont [11/16] %v21, 128
  %54 = vxpose.xlu0.b32.cont [12/16] %v22, 128
  %55 = vxpose.xlu0.b32.cont [13/16] %v23, 128
  %56 = vxpose.xlu0.b32.cont [14/16] %v24, 128
  %57 = vxpose.xlu0.b32.cont [15/16] %v25, 128
  %58 = vxpose.xlu0.b32.end [16/16] %v26, 128
  %v59 = vpop.trf.xlu0
  %v60 = vpop.trf.xlu0
  %v61 = vpop.trf.xlu0
  %v62 = vpop.trf.xlu0
  %v63 = vpop.trf.xlu0
  %v64 = vpop.trf.xlu0
  %v65 = vpop.trf.xlu0
  %v66 = vpop.trf.xlu0
  %v67 = vpop.trf.xlu0
  %v68 = vpop.trf.xlu0
  %v69 = vpop.trf.xlu0
  %v70 = vpop.trf.xlu0
  %v71 = vpop.trf.xlu0
  %v72 = vpop.trf.xlu0
  %v73 = vpop.trf.xlu0
  %v74 = vpop.trf.xlu0
  %75 = vmatpush.msra.mxu0 %v42
  %76 = vmatpush.msra.mxu0 %v41
  %77 = vmatpush.msra.mxu0 %v40
  %78 = vmatpush.msra.mxu0 %v39
  %79 = vmatpush.msra.mxu0 %v38
  %80 = vmatpush.msra.mxu0 %v37
  %81 = vmatpush.msra.mxu0 %v36
  %82 = vmatpush.msra.mxu0 %v35
  %83 = vmatpush.msra.mxu0 %v34
  %84 = vmatpush.msra.mxu0 %v33
  %85 = vmatpush.msra.mxu0 %v32
  %86 = vmatpush.msra.mxu0 %v31
  %87 = vmatpush.msra.mxu0 %v30
  %88 = vmatpush.msra.mxu0 %v29
  %89 = vmatpush.msra.mxu0 %v28
  %90 = vmatpush.msra.mxu0 %v27
  %91 = vmatmul.f32.gmra.mxu0 %v59
  %v92 = vpop.f32.mrf.mxu0
  %v93 = vadd.f32 0.0, %v92
  %94 = vdwg.mxu0
  %95 = vst [vmem:[%s2] sm:$0xff] %v93
  // Predicated region
  $region10: #{gdopt_forward.2} parent=0 // pred_check
    _
  $region11: #{gdopt_forward.2} parent=0 // pred_check_branch
    %97 = sbr.rel (0) target = $region13
  $region12: #{gdopt_forward.2} parent=0 // pred_region
    _
  $region13: #{gdopt_forward.2} parent=0 // pred_fallthru
    _
  // Predicated region
  $region14: #{gdopt_forward.2} parent=0 // pred_check
    _
  $region15: #{gdopt_forward.2} parent=0 // pred_check_branch
    %99 = sbr.rel (0) target = $region17
  $region16: #{gdopt_forward.2} parent=0 // pred_region
    _
  $region17: #{gdopt_forward.2} parent=0 // pred_fallthru
    _

// kernel: gdopt_forward.3
$region0: #{gdopt_forward.3}
  #allocation0 [shape = 'u32[]', space=smem, size = 0x4, offset = 0x4, fixed_abs, tag = 'smem constant byte address 0x4 - core index']
  #allocation1 [shape = 'u32[72,128]{1,0:T(1,128)}', space=vmem, size = 0x9000, scoped, tag = 'internal scratch']
  #allocation2 [shape = 'f32[8,8]{1,0:T(8,128)}', space=vmem, size = 0x1000, scoped, tag = 'scratch operand']
  #allocation3 [shape = 'f32[2]{0:T(128)}', space=smem, size = 0x200, scoped, tag = 'scratch operand']
  %s0 = inlined_call_operand.vmem [shape: f32[2], index: 0, kind: input, shape index: {}]
  %s1 = inlined_call_operand.vmem [shape: f32[8,128], index: 1, kind: input, shape index: {}]
  %s2 = inlined_call_operand.vmem [shape: f32[8,128], index: 2, kind: input, shape index: {}]
  %s3 = inlined_call_operand.vmem [shape: f32[128,256], index: 3, kind: input, shape index: {}]
  %s4 = inlined_call_operand.hbm [shape: f32[1], index: 4, kind: output, shape index: {}]
  %s5 = sld [smem:[#allocation0]]
  $region99: #{gdopt_forward.3} parent=0
    _
  %s7 = ssub.s32 1, %s5
  %s8 = scalar_select 0, %s7, %s5
  $region1: #{gdopt_forward.3} parent=0
    #allocation4 [shape = 'u8[512]{0}', space=smem, size = 0x200, scoped, tag = 'input window, operand 0, single buffered']
    #allocation5 [shape = 's32[2]{0}', space=sflag, size = 0x8, scoped, tag = 'scoped memory for gdopt_forward.3']
    #allocation6 [shape = 's32[2]{0}', space=sflag, size = 0x8, scoped, tag = 'scoped memory for gdopt_forward.3']
    #allocation7 [shape = 'u8[131072]{0}', space=vmem, size = 0x20000, scoped, tag = 'input window, operand 3']
    #allocation8 [shape = 'u8[512]{0}', space=smem, size = 0x200, scoped, tag = 'output window, operand 0, single buffered']
    %9 = vsyncpa [#allocation6], 0
    %10 = vsyncpa [#allocation5], 0
    loop: start=0, step=1, limit=4
    $region2: #{gdopt_forward.3} parent=1 // loop_pre_header
      _
    $region3: #{gdopt_forward.3} parent=1 // loop_header
      %s12 = sphi 0, %s16
      %p13 = scmp.ge.s32.totalorder %s12, 4
      %s20 = sphi 0, %s20
      %s22 = sphi 0, %s20
      %s23 = sphi 0, %s22
      %s37 = sphi 0, %s23
      %s41 = sphi 0, %s41
      %s43 = sphi 0, %s41
      %s44 = sphi 0, %s43
      %s58 = sphi 0, %s44
      %s62 = sphi 0, %s62
      %s64 = sphi 0, %s62
      %s65 = sphi 0, %s64
      %s79 = sphi 0, %s65
      %s85 = sphi 0, %s87
      %s88 = sphi 0, %s85
      %s89 = sphi 0, %s88
      %s105 = sphi 0, %s89
      %s109 = sphi 0, %s109
      %s111 = sphi 0, %s109
      %s112 = sphi 0, %s111
      %s126 = sphi 0, %s112
    $region4: #{gdopt_forward.3} parent=1 // loop_header_branch
      %15 = sbr.rel (%p13) target = $region8
    $region5: #{gdopt_forward.3} parent=1 // loop_body
      %s17 = ssub.s32 %s12, 1
      %s18 = ssub.s32 %s12, 2
      %s19 = sadd.s32 %s12, 1
      %s21 = sadd.s32 %s20, 1
      %p24 = scmp.eq.s32.totalorder %s12, 1
      %p25 = scmp.ne.s32.totalorder %s20, %s22
      %p26 = scmp.eq.s32.totalorder %s12, 0
      %p27 = por %p25, %p26
      %p28 = scmp.ne.s32.totalorder %s20, %s22
      %p29 = scmp.eq.s32.totalorder %s17, 1
      %p30 = por %p28, %p29
      %p31 = scmp.ne.s32.totalorder %s22, %s23
      %p32 = scmp.eq.s32.totalorder %s17, 0
      %p33 = por %p31, %p32
      %p34 = scmp.ne.s32.totalorder %s22, %s23
      %p35 = scmp.eq.s32.totalorder %s18, 1
      %p36 = por %p34, %p35
      %p38 = scmp.ne.s32.totalorder %s23, %s37
      %p39 = scmp.eq.s32.totalorder %s18, 0
      %p40 = por %p38, %p39
      %s42 = sadd.s32 %s41, 1
      %p45 = scmp.eq.s32.totalorder %s12, 1
      %p46 = scmp.ne.s32.totalorder %s41, %s43
      %p47 = scmp.eq.s32.totalorder %s12, 0
      %p48 = por %p46, %p47
      %p49 = scmp.ne.s32.totalorder %s41, %s43
      %p50 = scmp.eq.s32.totalorder %s17, 1
      %p51 = por %p49, %p50
      %p52 = scmp.ne.s32.totalorder %s43, %s44
      %p53 = scmp.eq.s32.totalorder %s17, 0
      %p54 = por %p52, %p53
      %p55 = scmp.ne.s32.totalorder %s43, %s44
      %p56 = scmp.eq.s32.totalorder %s18, 1
      %p57 = por %p55, %p56
      %p59 = scmp.ne.s32.totalorder %s44, %s58
      %p60 = scmp.eq.s32.totalorder %s18, 0
      %p61 = por %p59, %p60
      %s63 = sadd.s32 %s62, 1
      %p66 = scmp.eq.s32.totalorder %s12, 1
      %p67 = scmp.ne.s32.totalorder %s62, %s64
      %p68 = scmp.eq.s32.totalorder %s12, 0
      %p69 = por %p67, %p68
      %p70 = scmp.ne.s32.totalorder %s62, %s64
      %p71 = scmp.eq.s32.totalorder %s17, 1
      %p72 = por %p70, %p71
      %p73 = scmp.ne.s32.totalorder %s64, %s65
      %p74 = scmp.eq.s32.totalorder %s17, 0
      %p75 = por %p73, %p74
      %p76 = scmp.ne.s32.totalorder %s64, %s65
      %p77 = scmp.eq.s32.totalorder %s18, 1
      %p78 = por %p76, %p77
      %p80 = scmp.ne.s32.totalorder %s65, %s79
      %p81 = scmp.eq.s32.totalorder %s18, 0
      %p82 = por %p80, %p81
      %s83 = ssub.s32 %s12, %s19
      %p84 = scmp.eq.s32.totalorder %s83, 0
      %s86 = sadd.s32 %s85, 1
      %s87 = scalar_select %p84, %s85, %s86
      %p90 = pneg %p84
      %p91 = scmp.eq.s32.totalorder %s12, 1
      %p92 = por %p90, %p91
      %p93 = scmp.ne.s32.totalorder %s85, %s88
      %p94 = scmp.eq.s32.totalorder %s12, 0
      %p95 = por %p93, %p94
      %p96 = scmp.ne.s32.totalorder %s85, %s88
      %p97 = scmp.eq.s32.totalorder %s17, 1
      %p98 = por %p96, %p97
      %p99 = scmp.ne.s32.totalorder %s88, %s89
      %p100 = scmp.eq.s32.totalorder %s17, 0
      %p101 = por %p99, %p100
      %p102 = scmp.ne.s32.totalorder %s88, %s89
      %p103 = scmp.eq.s32.totalorder %s18, 1
      %p104 = por %p102, %p103
      %p106 = scmp.ne.s32.totalorder %s89, %s105
      %p107 = scmp.eq.s32.totalorder %s18, 0
      %p108 = por %p106, %p107
      %s110 = sadd.s32 %s109, 1
      %p113 = scmp.eq.s32.totalorder %s12, 1
      %p114 = scmp.ne.s32.totalorder %s109, %s111
      %p115 = scmp.eq.s32.totalorder %s12, 0
      %p116 = por %p114, %p115
      %p117 = scmp.ne.s32.totalorder %s109, %s111
      %p118 = scmp.eq.s32.totalorder %s17, 1
      %p119 = por %p117, %p118
      %p120 = scmp.ne.s32.totalorder %s111, %s112
      %p121 = scmp.eq.s32.totalorder %s17, 0
      %p122 = por %p120, %p121
      %p123 = scmp.ne.s32.totalorder %s111, %s112
      %p124 = scmp.eq.s32.totalorder %s18, 1
      %p125 = por %p123, %p124
      %p127 = scmp.ne.s32.totalorder %s112, %s126
      %p128 = scmp.eq.s32.totalorder %s18, 0
      %p129 = por %p127, %p128
      %p130 = scmp.le.s32.totalorder 1, %s12
      %p131 = scmp.lt.s32.totalorder %s12, 3
      %p132 = pnand %p130, %p131
      %p133 = pneg %p132
      // Predicated region
      $region9: #{gdopt_forward.3} parent=5 // pred_check
        _
      $region10: #{gdopt_forward.3} parent=5 // pred_check_branch
        %135 = sbr.rel (%p132) target = $region12
      $region11: #{gdopt_forward.3} parent=5 // pred_region
        %s136 = ssub.s32 %s12, 1
        // Predicated region
        $region13: #{gdopt_forward.3} parent=11 // pred_check
          %p137 = pneg %p33
        $region14: #{gdopt_forward.3} parent=11 // pred_check_branch
          %139 = sbr.rel (%p137) target = $region16
        $region15: #{gdopt_forward.3} parent=11 // pred_region
          %141 = vsyncadd [#allocation6], 0
          %s143 = sshll.u32 %s0, 4
          %s144 = int_to_ptr.vmem [resolvable:$true] %s143
          %146 = dma.vmem_to_smem %s144, 16, [#allocation4], [#allocation6]
        $region16: #{gdopt_forward.3} parent=11 // pred_fallthru
          _
        // Predicated region
        $region17: #{gdopt_forward.3} parent=11 // pred_check
          %p147 = pneg %p54
        $region18: #{gdopt_forward.3} parent=11 // pred_check_branch
          %149 = sbr.rel (%p147) target = $region20
        $region19: #{gdopt_forward.3} parent=11 // pred_region
          _
        $region20: #{gdopt_forward.3} parent=11 // pred_fallthru
          _
        // Predicated region
        $region21: #{gdopt_forward.3} parent=11 // pred_check
          %p150 = pneg %p75
        $region22: #{gdopt_forward.3} parent=11 // pred_check_branch
          %152 = sbr.rel (%p150) target = $region24
        $region23: #{gdopt_forward.3} parent=11 // pred_region
          _
        $region24: #{gdopt_forward.3} parent=11 // pred_fallthru
          _
      $region12: #{gdopt_forward.3} parent=5 // pred_fallthru
        _
      %p153 = scmp.lt.s32.totalorder %s12, 2
      // Predicated region
      $region25: #{gdopt_forward.3} parent=5 // pred_check
        %p154 = pneg %p153
      $region26: #{gdopt_forward.3} parent=5 // pred_check_branch
        %156 = sbr.rel (%p154) target = $region28
      $region27: #{gdopt_forward.3} parent=5 // pred_region
        // Predicated region
        $region29: #{gdopt_forward.3} parent=27 // pred_check
          %p157 = pneg %p95
        $region30: #{gdopt_forward.3} parent=27 // pred_check_branch
          %159 = sbr.rel (%p157) target = $region32
        $region31: #{gdopt_forward.3} parent=27 // pred_region
          %s160 = sand.u32 %s85, 1
          %s161 = sand.u32 %s85, 1
          %s162 = smul.addr %s161, 128
          %s163 = scalar_lea.vmem [#allocation7], %s162
          %s164 = smul.addr %s12, 8
          %s165 = scalar_lea.vmem %s3, %s164
          // Predicated region
          $region33: #{gdopt_forward.3} parent=31 // pred_check
            _
          $region34: #{gdopt_forward.3} parent=31 // pred_check_branch
            %167 = sbr.rel (0) target = $region36
          $region35: #{gdopt_forward.3} parent=31 // pred_region
            // Predicated region
            $region37: #{gdopt_forward.3} parent=35 // pred_check
              _
            $region38: #{gdopt_forward.3} parent=35 // pred_check_branch
              %169 = sbr.rel (0) target = $region40
            $region39: #{gdopt_forward.3} parent=35 // pred_region
              // Predicated region
              $region52: #{gdopt_forward.3} parent=39 // pred_check
                _
              $region53: #{gdopt_forward.3} parent=39 // pred_check_branch
                %215 = sbr.rel (0) target = $region55
              $region54: #{gdopt_forward.3} parent=39 // pred_region
                loop: start=0, step=1, limit=1
                $region56: #{gdopt_forward.3} parent=54 // loop_pre_header
                  _
                $region57: #{gdopt_forward.3} parent=54 // loop_header
                  %s217 = sphi 0, %s221
                  %p218 = scmp.ge.s32.totalorder %s217, 1
                  %s222 = sphi %s165, %s165
                  %s223 = sphi %s163, %s163
                $region58: #{gdopt_forward.3} parent=54 // loop_header_branch
                  %220 = sbr.rel (%p218) target = $region62
                $region59: #{gdopt_forward.3} parent=54 // loop_body
                  %v224 = vld [vmem:[%s222] sm:$0xff]
                  %225 = vst [vmem:[%s223] sm:$0xff] %v224
                  %v226 = vld [vmem:[%s222 + $0x10] sm:$0xff]
                  %227 = vst [vmem:[%s223 + $0x8] sm:$0xff] %v226
                  %v228 = vld [vmem:[%s222 + $0x20] sm:$0xff]
                  %229 = vst [vmem:[%s223 + $0x10] sm:$0xff] %v228
                  %v230 = vld [vmem:[%s222 + $0x30] sm:$0xff]
                  %231 = vst [vmem:[%s223 + $0x18] sm:$0xff] %v230
                  %v232 = vld [vmem:[%s222 + $0x40] sm:$0xff]
                  %233 = vst [vmem:[%s223 + $0x20] sm:$0xff] %v232
                  %v234 = vld [vmem:[%s222 + $0x50] sm:$0xff]
                  %235 = vst [vmem:[%s223 + $0x28] sm:$0xff] %v234
                  %v236 = vld [vmem:[%s222 + $0x60] sm:$0xff]
                  %237 = vst [vmem:[%s223 + $0x30] sm:$0xff] %v236
                  %v238 = vld [vmem:[%s222 + $0x70] sm:$0xff]
                  %239 = vst [vmem:[%s223 + $0x38] sm:$0xff] %v238
                  %v240 = vld [vmem:[%s222 + $0x80] sm:$0xff]
                  %241 = vst [vmem:[%s223 + $0x40] sm:$0xff] %v240
                  %v242 = vld [vmem:[%s222 + $0x90] sm:$0xff]
                  %243 = vst [vmem:[%s223 + $0x48] sm:$0xff] %v242
                  %v244 = vld [vmem:[%s222 + $0xa0] sm:$0xff]
                  %245 = vst [vmem:[%s223 + $0x50] sm:$0xff] %v244
                  %v246 = vld [vmem:[%s222 + $0xb0] sm:$0xff]
                  %247 = vst [vmem:[%s223 + $0x58] sm:$0xff] %v246
                  %v248 = vld [vmem:[%s222 + $0xc0] sm:$0xff]
                  %249 = vst [vmem:[%s223 + $0x60] sm:$0xff] %v248
                  %v250 = vld [vmem:[%s222 + $0xd0] sm:$0xff]
                  %251 = vst [vmem:[%s223 + $0x68] sm:$0xff] %v250
                  %v252 = vld [vmem:[%s222 + $0xe0] sm:$0xff]
                  %253 = vst [vmem:[%s223 + $0x70] sm:$0xff] %v252
                  %v254 = vld [vmem:[%s222 + $0xf0] sm:$0xff]
                  %255 = vst [vmem:[%s223 + $0x78] sm:$0xff] %v254
                $region60: #{gdopt_forward.3} parent=54 // loop_footer
                  %s221 = sadd.s32 1, %s217
                $region61: #{gdopt_forward.3} parent=54 // loop_footer_branch
                  %216 = sbr.rel target = $region57
                $region62: #{gdopt_forward.3} parent=54 // loop_exit
                  _
              $region55: #{gdopt_forward.3} parent=39 // pred_fallthru
                _
              // Predicated region
              $region63: #{gdopt_forward.3} parent=39 // pred_check
                _
              $region64: #{gdopt_forward.3} parent=39 // pred_check_branch
                %257 = sbr.rel target = $region66
              $region65: #{gdopt_forward.3} parent=39 // pred_region
                _
              $region66: #{gdopt_forward.3} parent=39 // pred_fallthru
                _
            $region40: #{gdopt_forward.3} parent=35 // pred_fallthru
              _
            // Predicated region
            $region41: #{gdopt_forward.3} parent=35 // pred_check
              _
            $region42: #{gdopt_forward.3} parent=35 // pred_check_branch
              %171 = sbr.rel target = $region44
            $region43: #{gdopt_forward.3} parent=35 // pred_region
              %s173 = ssub.s32 256, 1
              loop: start=0, step=1, limit=1
              $region45: #{gdopt_forward.3} parent=43 // loop_pre_header
                _
              $region46: #{gdopt_forward.3} parent=43 // loop_header
                %s175 = sphi 0, %s179
                %p176 = scmp.ge.s32.totalorder %s175, 1
                %s180 = sphi %s165, %s165
                %s181 = sphi %s163, %s163
              $region47: #{gdopt_forward.3} parent=43 // loop_header_branch
                %178 = sbr.rel (%p176) target = $region51
              $region48: #{gdopt_forward.3} parent=43 // loop_body
                %v182 = vld [vmem:[%s180] sm:%s173]
                %183 = vst [vmem:[%s181] sm:%s173] %v182
                %v184 = vld [vmem:[%s180 + $0x10] sm:%s173]
                %185 = vst [vmem:[%s181 + $0x8] sm:%s173] %v184
                %v186 = vld [vmem:[%s180 + $0x20] sm:%s173]
                %187 = vst [vmem:[%s181 + $0x10] sm:%s173] %v186
                %v188 = vld [vmem:[%s180 + $0x30] sm:%s173]
                %189 = vst [vmem:[%s181 + $0x18] sm:%s173] %v188
                %v190 = vld [vmem:[%s180 + $0x40] sm:%s173]
                %191 = vst [vmem:[%s181 + $0x20] sm:%s173] %v190
                %v192 = vld [vmem:[%s180 + $0x50] sm:%s173]
                %193 = vst [vmem:[%s181 + $0x28] sm:%s173] %v192
                %v194 = vld [vmem:[%s180 + $0x60] sm:%s173]
                %195 = vst [vmem:[%s181 + $0x30] sm:%s173] %v194
                %v196 = vld [vmem:[%s180 + $0x70] sm:%s173]
                %197 = vst [vmem:[%s181 + $0x38] sm:%s173] %v196
                %v198 = vld [vmem:[%s180 + $0x80] sm:%s173]
                %199 = vst [vmem:[%s181 + $0x40] sm:%s173] %v198
                %v200 = vld [vmem:[%s180 + $0x90] sm:%s173]
                %201 = vst [vmem:[%s181 + $0x48] sm:%s173] %v200
                %v202 = vld [vmem:[%s180 + $0xa0] sm:%s173]
                %203 = vst [vmem:[%s181 + $0x50] sm:%s173] %v202
                %v204 = vld [vmem:[%s180 + $0xb0] sm:%s173]
                %205 = vst [vmem:[%s181 + $0x58] sm:%s173] %v204
                %v206 = vld [vmem:[%s180 + $0xc0] sm:%s173]
                %207 = vst [vmem:[%s181 + $0x60] sm:%s173] %v206
                %v208 = vld [vmem:[%s180 + $0xd0] sm:%s173]
                %209 = vst [vmem:[%s181 + $0x68] sm:%s173] %v208
                %v210 = vld [vmem:[%s180 + $0xe0] sm:%s173]
                %211 = vst [vmem:[%s181 + $0x70] sm:%s173] %v210
                %v212 = vld [vmem:[%s180 + $0xf0] sm:%s173]
                %213 = vst [vmem:[%s181 + $0x78] sm:%s173] %v212
              $region49: #{gdopt_forward.3} parent=43 // loop_footer
                %s179 = sadd.s32 1, %s175
              $region50: #{gdopt_forward.3} parent=43 // loop_footer_branch
                %174 = sbr.rel target = $region46
              $region51: #{gdopt_forward.3} parent=43 // loop_exit
                _
            $region44: #{gdopt_forward.3} parent=35 // pred_fallthru
              _
          $region36: #{gdopt_forward.3} parent=31 // pred_fallthru
            _
          %258 = vnop
        $region32: #{gdopt_forward.3} parent=27 // pred_fallthru
          _
      $region28: #{gdopt_forward.3} parent=5 // pred_fallthru
        _
      %p259 = scmp.le.s32.totalorder 1, %s12
      %p260 = scmp.lt.s32.totalorder %s12, 3
      %p261 = pnand %p259, %p260
      %p262 = pneg %p261
      // Predicated region
      $region67: #{gdopt_forward.3} parent=5 // pred_check
        _
      $region68: #{gdopt_forward.3} parent=5 // pred_check_branch
        %264 = sbr.rel (%p261) target = $region70
      $region69: #{gdopt_forward.3} parent=5 // pred_region
        %s265 = ssub.s32 %s12, 1
        // Predicated region
        $region71: #{gdopt_forward.3} parent=69 // pred_check
          %p266 = pneg %p33
        $region72: #{gdopt_forward.3} parent=69 // pred_check_branch
          %268 = sbr.rel (%p266) target = $region74
        $region73: #{gdopt_forward.3} parent=69 // pred_region
          %270 = dma.done [#allocation6], 16
        $region74: #{gdopt_forward.3} parent=69 // pred_fallthru
          _
        %s271 = sand.u32 %s88, 1
        %s272 = sand.u32 %s88, 1
        %s273 = smul.addr %s272, 128
        %s274 = scalar_lea.vmem [#allocation7], %s273
        // Predicated region
        $region75: #{gdopt_forward.3} parent=69 // pred_check
          %p275 = pneg %p101
        $region76: #{gdopt_forward.3} parent=69 // pred_check_branch
          %277 = sbr.rel (%p275) target = $region78
        $region77: #{gdopt_forward.3} parent=69 // pred_region
          _
        $region78: #{gdopt_forward.3} parent=69 // pred_fallthru
          _
        %278 = sfence
        %p279 = pneg %p33
        %p280 = pneg %p30
        %p281 = pneg %p54
        %p282 = pneg %p51
        %p283 = pneg %p75
        %p284 = pneg %p72
        %s285 = sand.u32 %s88, 1
        %s286 = sand.u32 %s88, 1
        %s287 = smul.addr %s286, 128
        %s288 = scalar_lea.vmem [#allocation7], %s287
        %p289 = pneg %p101
        %p290 = pneg %p98
        %p291 = pneg %p122
        %p292 = pneg %p119
        %p293 = scmp.eq.s32.totalorder %s17, 0
        // Predicated region
        $region79: #{gdopt_forward.3} parent=69 // pred_check
          %p294 = pneg %p293
        $region80: #{gdopt_forward.3} parent=69 // pred_check_branch
          %296 = sbr.rel (%p294) target = $region82
        $region81: #{gdopt_forward.3} parent=69 // pred_region
          %v297 = vld [vmem:[%s1] sm:$0xff]
          %298 = vmatpush.xpose.msra.mxu0 0.0
          %299 = vmatpush.xpose.msra.mxu0 0.0
          %300 = vmatpush.xpose.msra.mxu0 0.0
          %301 = vmatpush.xpose.msra.mxu0 0.0
          %302 = vmatpush.xpose.msra.mxu0 0.0
          %303 = vmatpush.xpose.msra.mxu0 0.0
          %304 = vmatpush.xpose.msra.mxu0 0.0
          %305 = vmatpush.xpose.msra.mxu0 0.0
          %306 = vmatpush.xpose.msra.mxu0 0.0
          %307 = vmatpush.xpose.msra.mxu0 0.0
          %308 = vmatpush.xpose.msra.mxu0 0.0
          %309 = vmatpush.xpose.msra.mxu0 0.0
          %310 = vmatpush.xpose.msra.mxu0 0.0
          %311 = vmatpush.xpose.msra.mxu0 0.0
          %312 = vmatpush.xpose.msra.mxu0 0.0
          %313 = vmatpush.xpose.msra.mxu0 %v297
          %314 = vmatmul.f32.gmra.mxu0 %v297
          %v315 = vpop.f32.mrf.mxu0
          %v316 = vadd.f32 0.0, %v315
          %317 = vdwg.mxu0
          %vm318 = vcmask 64512
          %319 = vst.msk [vmem:[#allocation2] sm:$0xff] %vm318, %v316
          %s320 = scalar_lea.smem [#allocation3], 0
          %321 = sst [smem:[%s320]] 0.0
          %s322 = scalar_lea.smem [#allocation3], 1
          %323 = sst [smem:[%s322]] 0.0
        $region82: #{gdopt_forward.3} parent=69 // pred_fallthru
          _
        %v324 = vld [vmem:[%s2] sm:$0xff]
        %v325 = vld [vmem:[%s274] sm:$0xff]
        %v326 = vld [vmem:[%s274 + $0x8] sm:$0xff]
        %v327 = vld [vmem:[%s274 + $0x10] sm:$0xff]
        %v328 = vld [vmem:[%s274 + $0x18] sm:$0xff]
        %v329 = vld [vmem:[%s274 + $0x20] sm:$0xff]
        %v330 = vld [vmem:[%s274 + $0x28] sm:$0xff]
        %v331 = vld [vmem:[%s274 + $0x30] sm:$0xff]
        %v332 = vld [vmem:[%s274 + $0x38] sm:$0xff]
        %v333 = vld [vmem:[%s274 + $0x40] sm:$0xff]
        %v334 = vld [vmem:[%s274 + $0x48] sm:$0xff]
        %v335 = vld [vmem:[%s274 + $0x50] sm:$0xff]
        %v336 = vld [vmem:[%s274 + $0x58] sm:$0xff]
        %v337 = vld [vmem:[%s274 + $0x60] sm:$0xff]
        %v338 = vld [vmem:[%s274 + $0x68] sm:$0xff]
        %v339 = vld [vmem:[%s274 + $0x70] sm:$0xff]
        %v340 = vld [vmem:[%s274 + $0x78] sm:$0xff]
        %341 = vmatpush.msra.mxu0 %v340
        %342 = vmatpush.msra.mxu0 %v339
        %343 = vmatpush.msra.mxu0 %v338
        %344 = vmatpush.msra.mxu0 %v337
        %345 = vmatpush.msra.mxu0 %v336
        %346 = vmatpush.msra.mxu0 %v335
        %347 = vmatpush.msra.mxu0 %v334
        %348 = vmatpush.msra.mxu0 %v333
        %349 = vmatpush.msra.mxu0 %v332
        %350 = vmatpush.msra.mxu0 %v331
        %351 = vmatpush.msra.mxu0 %v330
        %352 = vmatpush.msra.mxu0 %v329
        %353 = vmatpush.msra.mxu0 %v328
        %354 = vmatpush.msra.mxu0 %v327
        %355 = vmatpush.msra.mxu0 %v326
        %356 = vmatpush.msra.mxu0 %v325
        %357 = vmatmul.f32.gmra.mxu0 %v324
        %v358 = vpop.f32.mrf.mxu0
        %v359 = vadd.f32 0.0, %v358
        %360 = vdwg.mxu0
        %v361 = vld [vmem:[#allocation2] sm:$0xff]
        %vm362 = vcmask 64512
        %v364 = vsel %vm362, %v361, 0
        %366 = vmatpush.msra.mxu0 0.0
        %367 = vmatpush.msra.mxu0 0.0
        %368 = vmatpush.msra.mxu0 0.0
        %369 = vmatpush.msra.mxu0 0.0
        %370 = vmatpush.msra.mxu0 0.0
        %371 = vmatpush.msra.mxu0 0.0
        %372 = vmatpush.msra.mxu0 0.0
        %373 = vmatpush.msra.mxu0 0.0
        %374 = vmatpush.msra.mxu0 0.0
        %375 = vmatpush.msra.mxu0 0.0
        %376 = vmatpush.msra.mxu0 0.0
        %377 = vmatpush.msra.mxu0 0.0
        %378 = vmatpush.msra.mxu0 0.0
        %379 = vmatpush.msra.mxu0 0.0
        %380 = vmatpush.msra.mxu0 0.0
        %381 = vmatpush.msra.mxu0 %v359
        %382 = vmatmul.f32.gmra.mxu0 %v364
        %v383 = vpop.f32.mrf.mxu0
        %v384 = vadd.f32 0.0, %v383
        %385 = vdwg.mxu0
        %v386 = vmul.f32 %v359, %v384
        %387 = vadd.xlane.f32.xlu0 %v386
        %v388 = vpop.xlane.xlu0 %387
        %v389 = vrot.slane %v388, 4
        %v390 = vadd.f32 %v388, %v389
        %v391 = vrot.slane %v390, 2
        %v392 = vadd.f32 %v390, %v391
        %v393 = vrot.slane %v392, 1
        %v394 = vadd.f32 %v392, %v393
        %s395 = vtos %v394
        %p396 = scmp.lt.s32.totalorder %s17, 1
        %s397 = sld [smem:[#allocation3]]
        %s398 = scalar_select %p396, %s395, 0.0
        %s399 = sadd.f32 %s397, %s398
        %s400 = scalar_lea.smem [#allocation3], 0
        %401 = sst [smem:[%s400]] %s399
        %s402 = sld [smem:[#allocation3 + $0x1]]
        %s403 = scalar_select %p396, 0.0, %s395
        %s404 = sadd.f32 %s402, %s403
        %s405 = scalar_lea.smem [#allocation3], 1
        %406 = sst [smem:[%s405]] %s404
        %p407 = scmp.eq.s32.totalorder %s17, 1
        // Predicated region
        $region83: #{gdopt_forward.3} parent=69 // pred_check
          %p408 = pneg %p407
        $region84: #{gdopt_forward.3} parent=69 // pred_check_branch
          %410 = sbr.rel (%p408) target = $region86
        $region85: #{gdopt_forward.3} parent=69 // pred_region
          %s411 = sld [smem:[#allocation4]]
          %s412 = sld [smem:[#allocation4 + $0x1]]
          %s413 = smul.f32 %s412, %s412
          %s414 = sld [smem:[#allocation3]]
          %v415 = vstv %s414
          %v416 = vrsqrt.pop %v415
          %v417 = vmul.f32 %v416, %v415
          %v418 = vmul.f32 %v417, %v416
          %v419 = vmul.f32 0.5, %v418
          %v420 = vsub.f32 1.5, %v419
          %v421 = vmul.f32 %v416, %v420
          %v422 = vmul.f32 %v415, %v421
          %vm423 = vcmp.eq.f32.partialorder %v415, inf
          %v424 = vsel %vm423, %v415, %v422
          %vm425 = vcmp.eq.f32.partialorder %v415, 0.0
          %v426 = vand.u32 %v415, 2147483648
          %v427 = vsel %vm425, %v426, %v424
          %s428 = vtos %v427
          %v429 = vstv %s413
          %v430 = vrcp.pop %v429
          %v431 = vmul.f32 %v429, %v430
          %v432 = vsub.f32 1.0, %v431
          %v433 = vmul.f32 %v430, %v432
          %v434 = vadd.f32 %v430, %v433
          %vm435 = vweird.f32 %v429
          %vm436 = vweird.f32 %v430
          %vm437 = vmor %vm435, %vm436
          %v438 = vsel %vm437, %v430, %v434
          %v439 = vand.u32 2147483647, %v429
          %vm440 = vcmp.eq.f32.partialorder %v439, 8.507059e+37
          %v441 = vand.u32 %v429, 2147483648
          %v442 = vor.u32 1.1754944e-38, %v441
          %v443 = vsel %vm440, %v442, %v438
          %s444 = vtos %v443
          %s445 = smul.f32 %s428, %s444
          %s446 = sld [smem:[#allocation3 + $0x1]]
          %v447 = vstv %s446
          %v448 = vrsqrt.pop %v447
          %v449 = vmul.f32 %v448, %v447
          %v450 = vmul.f32 %v449, %v448
          %v451 = vmul.f32 0.5, %v450
          %v452 = vsub.f32 1.5, %v451
          %v453 = vmul.f32 %v448, %v452
          %v454 = vmul.f32 %v447, %v453
          %vm455 = vcmp.eq.f32.partialorder %v447, inf
          %v456 = vsel %vm455, %v447, %v454
          %vm457 = vcmp.eq.f32.partialorder %v447, 0.0
          %v458 = vand.u32 %v447, 2147483648
          %v459 = vsel %vm457, %v458, %v456
          %s460 = vtos %v459
          %v461 = vstv %s413
          %v462 = vrcp.pop %v461
          %v463 = vmul.f32 %v461, %v462
          %v464 = vsub.f32 1.0, %v463
          %v465 = vmul.f32 %v462, %v464
          %v466 = vadd.f32 %v462, %v465
          %vm467 = vweird.f32 %v461
          %vm468 = vweird.f32 %v462
          %vm469 = vmor %vm467, %vm468
          %v470 = vsel %vm469, %v462, %v466
          %v471 = vand.u32 2147483647, %v461
          %vm472 = vcmp.eq.f32.partialorder %v471, 8.507059e+37
          %v473 = vand.u32 %v461, 2147483648
          %v474 = vor.u32 1.1754944e-38, %v473
          %v475 = vsel %vm472, %v474, %v470
          %s476 = vtos %v475
          %s477 = smul.f32 %s460, %s476
          %s478 = ssub.f32 %s411, %s477
          %s479 = ssub.f32 0.0, %s445
          %p480 = scmp.lt.f32.partialorder %s478, 0.0
          %s481 = smul.f32 %s478, 250.0
          %s482 = smul.f32 %s481, %s481
          %s483 = scalar_select %p480, %s482, 0.0
          %s484 = sadd.f32 %s479, %s483
          %s485 = scalar_lea.smem [#allocation8], 0
          %486 = sst [smem:[%s485]] %s484
        $region86: #{gdopt_forward.3} parent=69 // pred_fallthru
          _
        // Predicated region
        $region87: #{gdopt_forward.3} parent=69 // pred_check
          %p487 = pneg %p119
        $region88: #{gdopt_forward.3} parent=69 // pred_check_branch
          %489 = sbr.rel (%p487) target = $region90
        $region89: #{gdopt_forward.3} parent=69 // pred_region
          %491 = vsyncadd [#allocation5], 0
          %s493 = sshll.u32 %s4, 4
          %s494 = int_to_ptr.hbm [resolvable:$true] %s493
          %496 = dma.smem_to_hbm [#allocation8], 16, %s494, [#allocation5]
        $region90: #{gdopt_forward.3} parent=69 // pred_fallthru
          _
        // Predicated region
        $region91: #{gdopt_forward.3} parent=69 // pred_check
          %p497 = pneg %p119
        $region92: #{gdopt_forward.3} parent=69 // pred_check_branch
          %499 = sbr.rel (%p497) target = $region94
        $region93: #{gdopt_forward.3} parent=69 // pred_region
          %501 = dma.done [#allocation5], 16
        $region94: #{gdopt_forward.3} parent=69 // pred_fallthru
          _
        %502 = sfence
      $region70: #{gdopt_forward.3} parent=5 // pred_fallthru
        _
      %p503 = scmp.le.s32.totalorder 2, %s12
      // Predicated region
      $region95: #{gdopt_forward.3} parent=5 // pred_check
        %p504 = pneg %p503
      $region96: #{gdopt_forward.3} parent=5 // pred_check_branch
        %506 = sbr.rel (%p504) target = $region98
      $region97: #{gdopt_forward.3} parent=5 // pred_region
        %s507 = ssub.s32 %s12, 2
      $region98: #{gdopt_forward.3} parent=5 // pred_fallthru
        _
    $region6: #{gdopt_forward.3} parent=1 // loop_footer
      %s16 = sadd.s32 1, %s12
    $region7: #{gdopt_forward.3} parent=1 // loop_footer_branch
      %11 = sbr.rel target = $region3
    $region8: #{gdopt_forward.3} parent=1 // loop_exit
      _
    %508 = vsyncpa [#allocation5], 1
    %s509 = scalar_lea.sflag [#allocation5], 1
    %510 = vsyncpa %s509, 1
    %511 = vsyncpa [#allocation6], 1
    %s512 = scalar_lea.sflag [#allocation6], 1
    %513 = vsyncpa %s512, 1

</llo_original>
